<compile_context>
chip_gen: v5e
topology: v5e:2x2
jax: 0.10.0
libtpu: 0.0.40
codegen_flags: <defaults>
</compile_context>

<pallas_src>
import jax
import jax.numpy as jnp
from jax.experimental import pallas as pl
from jax.experimental.pallas import tpu as pltpu


def _round_up(a: int, m: int) -> int:
    return -(-a // m) * m


# ----------------------------------------------------------------------------
# Kernels
# ----------------------------------------------------------------------------
def _kernel_acc_in_out(x_ref, w_enc_ref, b_enc_ref, gate_ref, w_dec_ref,
                       b_dec_ref, o_ref):
    """f32 output: accumulate decode partial products directly into o_ref."""
    k = pl.program_id(1)

    @pl.when(k == 0)
    def _():
        o_ref[...] = jnp.broadcast_to(b_dec_ref[...], o_ref.shape)

    # Encode this d_sae slab (MXU, f32 accumulation).
    pre = jnp.dot(x_ref[...], w_enc_ref[...],
                  preferred_element_type=jnp.float32) + b_enc_ref[...]
    # JumpReLU as a single select against the precomputed gate row.
    acts = jnp.where(pre > gate_ref[...], pre, 0.0)
    # Decode partial product accumulated into the resident output tile.
    o_ref[...] += jnp.dot(acts.astype(w_dec_ref.dtype), w_dec_ref[...],
                          preferred_element_type=jnp.float32)


def _kernel_scratch_acc(x_ref, w_enc_ref, b_enc_ref, gate_ref, w_dec_ref,
                        b_dec_ref, o_ref, acc_ref):
    """Non-f32 output: f32 VMEM scratch accumulator, cast on the last k step."""
    k = pl.program_id(1)

    @pl.when(k == 0)
    def _():
        acc_ref[...] = jnp.zeros_like(acc_ref)

    pre = jnp.dot(x_ref[...], w_enc_ref[...],
                  preferred_element_type=jnp.float32) + b_enc_ref[...]
    acts = jnp.where(pre > gate_ref[...], pre, 0.0)
    acc_ref[...] += jnp.dot(acts.astype(w_dec_ref.dtype), w_dec_ref[...],
                            preferred_element_type=jnp.float32)

    @pl.when(k == pl.num_programs(1) - 1)
    def _():
        o_ref[...] = (acc_ref[...] + b_dec_ref[...]).astype(o_ref.dtype)


# ----------------------------------------------------------------------------
# Tile selection helpers
# ----------------------------------------------------------------------------
def _select_tile_k(d_sae: int, requested: int, align: int = 128,
                   prefer: int = 256):
    """Pick a feature-axis tile.  Returns (tile_k, padded_d_sae)."""
    cap = _round_up(d_sae, align)
    req = max(align, min(requested, cap))
    req = (req // align) * align
    if req > prefer and req % prefer != 0:      # v6e/v7x MXU prefers 256-multiples
        req = (req // prefer) * prefer
    if d_sae % req == 0:
        return req, d_sae
    # Largest 128-aligned divisor of d_sae that is <= the request.
    best, t = 0, req
    while t >= align:
        if d_sae % t == 0:
            best = t
            break
        t -= align
    if best >= max(prefer, req // 2):
        return best, d_sae
    # Otherwise pad the feature axis; padded features are gated off (thr=+inf).
    return req, _round_up(d_sae, req)


def _vmem_need_bytes(tile_n, tile_k, d_model, csize, osize, separate_acc):
    dbuf = 2                                                   # double buffering
    weights = dbuf * 2 * d_model * tile_k * csize              # W_enc + W_dec tiles
    rows = dbuf * (2 * tile_k + d_model) * 4                   # b_enc, gate, b_dec
    x_tile = dbuf * tile_n * d_model * csize
    out_tile = dbuf * tile_n * d_model * osize
    acc = tile_n * d_model * 4 if separate_acc else 0
    intermediates = tile_n * tile_k * (4 + csize)              # pre (f32) + acts
    staging = 2 << 20                                          # MXU staging / misc
    return weights + rows + x_tile + out_tile + acc + intermediates + staging


# ----------------------------------------------------------------------------
# Wrapper
# ----------------------------------------------------------------------------
def jumprelu_sae_forward(x, w_enc, b_enc, threshold, w_dec, b_dec, *,
                         tile_n=None, tile_k=512,
                         compute_dtype=jnp.bfloat16):
    """JumpReLU SAE forward.  x: [..., d_model] -> recon: [..., d_model]."""
    orig_shape = x.shape
    d_model = orig_shape[-1]
    x2 = x.reshape(-1, d_model)
    N = x2.shape[0]
    d_sae = w_enc.shape[1]
    out_dtype = x.dtype
    csize = jnp.dtype(compute_dtype).itemsize
    osize = jnp.dtype(out_dtype).itemsize
    separate_acc = jnp.dtype(out_dtype) != jnp.dtype(jnp.float32)

    # ---- chip-aware VMEM budget ---------------------------------------------
    try:
        vmem_cap = int(pltpu.get_tpu_info().vmem_capacity_bytes)
    except Exception:
        vmem_cap = 64 << 20                 # conservative fallback (v7x per-TC)
    big_vmem = vmem_cap >= (96 << 20)       # v5e/v6e: 128 MiB; v7x: 64 MiB per TC
    vmem_budget = int(vmem_cap * 0.8)

    # ---- token-tile (tile_n) selection ---------------------------------------
    n_align = 16 if csize < 4 else 8        # bf16 packs 16 sublanes per vreg
    auto_tile_n = tile_n is None
    if auto_tile_n:
        tile_n = 512 if big_vmem else 256
    tile_n = min(tile_n, _round_up(N, n_align))
    tile_n = max(n_align, (tile_n // n_align) * n_align)
    # On small-VMEM / 2-TC chips (v7x) prefer >= 2 token tiles so the parallel
    # axis can shard across both cores.
    if auto_tile_n and not big_vmem and N > n_align and -(-N // tile_n) < 2:
        tile_n = max(n_align, _round_up(-(-N // 2), n_align))

    # ---- feature-tile (tile_k) selection -------------------------------------
    tile_k, d_sae_pad = _select_tile_k(d_sae, tile_k)

    # ---- shrink tiles until the working set fits the VMEM budget -------------
    while (_vmem_need_bytes(tile_n, tile_k, d_model, csize, osize, separate_acc)
           > vmem_budget and tile_n > n_align):
        tile_n = max(n_align, (tile_n // 2 // n_align) * n_align)
    while (_vmem_need_bytes(tile_n, tile_k, d_model, csize, osize, separate_acc)
           > vmem_budget and tile_k > 128):
        new_tk, new_pad = _select_tile_k(d_sae, max(128, tile_k // 2))
        if new_tk >= tile_k:
            break
        tile_k, d_sae_pad = new_tk, new_pad

    # ---- pad token axis -------------------------------------------------------
    n_pad = _round_up(N, tile_n)
    if n_pad != N:
        x2 = jnp.pad(x2, ((0, n_pad - N), (0, 0)))

    # ---- pad feature axis (padded features gated off with threshold = +inf) --
    if d_sae_pad != d_sae:
        pad = d_sae_pad - d_sae
        w_enc = jnp.pad(w_enc, ((0, 0), (0, pad)))
        w_dec = jnp.pad(w_dec, ((0, pad), (0, 0)))
        b_enc = jnp.pad(b_enc, ((0, pad),))
        threshold = jnp.pad(threshold.astype(jnp.float32), ((0, pad),),
                            constant_values=jnp.inf)

    grid = (n_pad // tile_n, d_sae_pad // tile_k)

    # Lane-dense f32 row vectors for the VPU-side params; gate precomputed once.
    b_enc_2d = b_enc.astype(jnp.float32).reshape(1, d_sae_pad)
    gate_2d = jnp.maximum(threshold.astype(jnp.float32), 0.0).reshape(1, d_sae_pad)
    b_dec_2d = b_dec.astype(jnp.float32).reshape(1, d_model)

    # MXU operands in compute dtype (bf16 by default); accumulation stays f32.
    x_c = x2.astype(compute_dtype)
    w_enc_c = w_enc.astype(compute_dtype)
    w_dec_c = w_dec.astype(compute_dtype)

    need = _vmem_need_bytes(tile_n, tile_k, d_model, csize, osize, separate_acc)
    vmem_limit = int(min(vmem_cap, max(need + (4 << 20), 32 << 20)))

    n_token_tiles = grid[0]
    cost = pl.CostEstimate(
        flops=4 * n_pad * d_model * d_sae_pad,               # encode + decode matmuls
        transcendentals=0,
        bytes_accessed=int(
            n_pad * d_model * csize                          # x, read once
            + n_token_tiles * 2 * d_model * d_sae_pad * csize  # weights re-streamed per token tile
            + n_token_tiles * (2 * d_sae_pad + d_model) * 4  # bias / gate rows
            + n_pad * d_model * osize))                      # output

    in_specs = [
        pl.BlockSpec((tile_n, d_model), lambda i, k: (i, 0)),   # x
        pl.BlockSpec((d_model, tile_k), lambda i, k: (0, k)),   # W_enc
        pl.BlockSpec((1, tile_k), lambda i, k: (0, k)),         # b_enc
        pl.BlockSpec((1, tile_k), lambda i, k: (0, k)),         # gate = max(thr, 0)
        pl.BlockSpec((tile_k, d_model), lambda i, k: (k, 0)),   # W_dec
        pl.BlockSpec((1, d_model), lambda i, k: (0, 0)),        # b_dec
    ]
    out_spec = pl.BlockSpec((tile_n, d_model), lambda i, k: (i, 0))

    if separate_acc:
        kernel = _kernel_scratch_acc
        scratch_shapes = [pltpu.VMEM((tile_n, d_model), jnp.float32)]
    else:
        kernel = _kernel_acc_in_out
        scratch_shapes = []

    out = pl.pallas_call(
        kernel,
        out_shape=jax.ShapeDtypeStruct((n_pad, d_model), out_dtype),
        grid_spec=pltpu.PrefetchScalarGridSpec(
            num_scalar_prefetch=0,
            grid=grid,
            in_specs=in_specs,
            out_specs=out_spec,
            scratch_shapes=scratch_shapes),
        compiler_params=pltpu.CompilerParams(
            dimension_semantics=("parallel", "arbitrary"),
            vmem_limit_bytes=vmem_limit),
        cost_estimate=cost,
    )(x_c, w_enc_c, b_enc_2d, gate_2d, w_dec_c, b_dec_2d)

    out = out[:N] if n_pad != N else out
    return out.reshape(orig_shape)


# ---- pure-JAX references (original mask * relu formulation) ------------------
def _reference_forward(x, w_enc, b_enc, threshold, w_dec, b_dec):
    hi = jax.lax.Precision.HIGHEST
    pre = jnp.dot(x, w_enc, precision=hi) + b_enc
    mask = pre > threshold
    acts = mask * jnp.maximum(pre, 0.0)
    return jnp.dot(acts, w_dec, precision=hi) + b_dec


def _reference_forward_bf16(x, w_enc, b_enc, threshold, w_dec, b_dec):
    # Matches the kernel's bf16-operand / f32-accumulation numerics.
    hi = jax.lax.Precision.HIGHEST
    xb = x.astype(jnp.bfloat16).astype(jnp.float32)
    web = w_enc.astype(jnp.bfloat16).astype(jnp.float32)
    wdb = w_dec.astype(jnp.bfloat16).astype(jnp.float32)
    pre = jnp.dot(xb, web, precision=hi) + b_enc
    mask = pre > threshold
    acts = (mask * jnp.maximum(pre, 0.0)).astype(jnp.bfloat16).astype(jnp.float32)
    return jnp.dot(acts, wdb, precision=hi) + b_dec


if __name__ == "__main__":
    # Small shapes consistent with the module: N tokens x d_model -> d_sae feats.
    N, d_model, d_sae = 256, 128, 512

    key = jax.random.PRNGKey(0)
    kx, ke, kd, kbe, kbd, kt = jax.random.split(key, 6)

    x = jax.random.normal(kx, (N, d_model), dtype=jnp.float32)
    # Module __init__ uses zeros; small random values so the gate is exercised.
    w_enc = jax.random.normal(ke, (d_model, d_sae), dtype=jnp.float32) * 0.05
    w_dec = jax.random.normal(kd, (d_sae, d_model), dtype=jnp.float32) * 0.05
    b_enc = jax.random.normal(kbe, (d_sae,), dtype=jnp.float32) * 0.1
    b_dec = jax.random.normal(kbd, (d_model,), dtype=jnp.float32) * 0.1
    threshold = jax.random.uniform(kt, (d_sae,), dtype=jnp.float32) * 0.2

    ref_f32 = _reference_forward(x, w_enc, b_enc, threshold, w_dec, b_dec)
    ref_bf16 = _reference_forward_bf16(x, w_enc, b_enc, threshold, w_dec, b_dec)

    # 1) f32 compute, explicit tiles -> grid (2, 2); accumulate-into-o_ref path.
    out_f32 = jumprelu_sae_forward(x, w_enc, b_enc, threshold, w_dec, b_dec,
                                   tile_n=128, tile_k=256,
                                   compute_dtype=jnp.float32)
    out_f32 = jax.block_until_ready(out_f32)
    assert out_f32.shape == (N, d_model) and out_f32.dtype == jnp.float32
    assert jnp.allclose(out_f32, ref_f32, atol=3e-2, rtol=3e-2)

    # 2) bf16 MXU operands (default), chip-derived tile sizes.
    out_bf16 = jumprelu_sae_forward(x, w_enc, b_enc, threshold, w_dec, b_dec)
    out_bf16 = jax.block_until_ready(out_bf16)
    assert out_bf16.shape == (N, d_model) and out_bf16.dtype == jnp.float32
    assert jnp.allclose(out_bf16, ref_bf16, atol=3e-2, rtol=3e-2)

    # 3) non-128-multiple feature axis -> exercises +inf-gated feature padding.
    d_sae2 = 320
    w_enc2, w_dec2 = w_enc[:, :d_sae2], w_dec[:d_sae2]
    b_enc2, thr2 = b_enc[:d_sae2], threshold[:d_sae2]
    out_pad = jumprelu_sae_forward(x, w_enc2, b_enc2, thr2, w_dec2, b_dec,
                                   compute_dtype=jnp.float32)
    out_pad = jax.block_until_ready(out_pad)
    ref_pad = _reference_forward(x, w_enc2, b_enc2, thr2, w_dec2, b_dec)
    assert jnp.allclose(out_pad, ref_pad, atol=3e-2, rtol=3e-2)

    # 4) bf16 input/output -> exercises the f32-scratch accumulator kernel.
    x_bf16 = x.astype(jnp.bfloat16)
    out_b = jumprelu_sae_forward(x_bf16, w_enc, b_enc, threshold, w_dec, b_dec,
                                 tile_n=128, tile_k=256)
    out_b = jax.block_until_ready(out_b)
    assert out_b.shape == (N, d_model) and out_b.dtype == jnp.bfloat16
    assert jnp.allclose(out_b.astype(jnp.float32), ref_bf16, atol=6e-2, rtol=6e-2)

    print("KERNEL_OK")
</pallas_src>

<mosaic_0001>
module attributes {stable_mosaic.version = 11 : i64} {
  func.func @_kernel_acc_in_out(%arg0: i32, %arg1: i32, %arg2: memref<128x128xf32, #tpu.memory_space<vmem>>, %arg3: memref<128x256xf32, #tpu.memory_space<vmem>>, %arg4: memref<1x256xf32, #tpu.memory_space<vmem>>, %arg5: memref<1x256xf32, #tpu.memory_space<vmem>>, %arg6: memref<256x128xf32, #tpu.memory_space<vmem>>, %arg7: memref<1x128xf32, #tpu.memory_space<vmem>>, %arg8: memref<128x128xf32, #tpu.memory_space<vmem>>) attributes {dimension_semantics = [#tpu.dimension_semantics<parallel>, #tpu.dimension_semantics<arbitrary>], iteration_bounds = array<i64: 2, 2>, scalar_prefetch = 0 : i64, scratch_operands = 0 : i64, tpu.core_type = #tpu.core_type<tc>, window_params = [{transform_indices = @transform_0, window_bounds = array<i64: 128, 128>}, {transform_indices = @transform_1, window_bounds = array<i64: 128, 256>}, {transform_indices = @transform_2, window_bounds = array<i64: 1, 256>}, {transform_indices = @transform_3, window_bounds = array<i64: 1, 256>}, {transform_indices = @transform_4, window_bounds = array<i64: 256, 128>}, {pipeline_mode = #tpu.pipeline_mode<synchronous>, transform_indices = @transform_5, window_bounds = array<i64: 1, 128>}, {transform_indices = @transform_6, window_bounds = array<i64: 128, 128>}]} {
    %c0_i32 = arith.constant 0 : i32
    %0 = arith.cmpi eq, %arg1, %c0_i32 : i32
    %1 = arith.extui %0 : i1 to i32
    %c0_i32_0 = arith.constant 0 : i32
    %2 = arith.cmpi ne, %1, %c0_i32_0 : i32
    scf.if %2 {
      %c0_16 = arith.constant 0 : index
      %c0_17 = arith.constant 0 : index
      %19 = vector.load %arg7[%c0_16, %c0_17] : memref<1x128xf32, #tpu.memory_space<vmem>>, vector<1x128xf32>
      %20 = vector.shape_cast %19 : vector<1x128xf32> to vector<1x128xf32>
      %21 = vector.broadcast %20 : vector<1x128xf32> to vector<128x128xf32>
      %c0_18 = arith.constant 0 : index
      %c0_19 = arith.constant 0 : index
      %22 = vector.load %arg8[%c0_18, %c0_19] : memref<128x128xf32, #tpu.memory_space<vmem>>, vector<128x128xf32>
      tpu.vector_store %arg8[%c0_18, %c0_19], %21 {strides = array<i32>} : memref<128x128xf32, #tpu.memory_space<vmem>>, vector<128x128xf32>,
    } else {
    }
    %c0 = arith.constant 0 : index
    %c0_1 = arith.constant 0 : index
    %3 = vector.load %arg2[%c0, %c0_1] : memref<128x128xf32, #tpu.memory_space<vmem>>, vector<128x128xf32>
    %c0_2 = arith.constant 0 : index
    %c0_3 = arith.constant 0 : index
    %4 = vector.load %arg3[%c0_2, %c0_3] : memref<128x256xf32, #tpu.memory_space<vmem>>, vector<128x256xf32>
    %cst = arith.constant dense<0.000000e+00> : vector<128x256xf32>
    %5 = tpu.matmul %3, %4, %cst {dimension_numbers = #tpu.dot_dimension_numbers<[1], [0], [0], [1], [0, 0, 1, 1], [], []>} : vector<128x128xf32>, vector<128x256xf32>, vector<128x256xf32> -> vector<128x256xf32>
    %c0_4 = arith.constant 0 : index
    %c0_5 = arith.constant 0 : index
    %6 = vector.load %arg4[%c0_4, %c0_5] : memref<1x256xf32, #tpu.memory_space<vmem>>, vector<1x256xf32>
    %7 = vector.broadcast %6 : vector<1x256xf32> to vector<128x256xf32>
    %8 = arith.addf %5, %7 : vector<128x256xf32>
    %c0_6 = arith.constant 0 : index
    %c0_7 = arith.constant 0 : index
    %9 = vector.load %arg5[%c0_6, %c0_7] : memref<1x256xf32, #tpu.memory_space<vmem>>, vector<1x256xf32>
    %10 = vector.broadcast %9 : vector<1x256xf32> to vector<128x256xf32>
    %11 = arith.cmpf ogt, %8, %10 : vector<128x256xf32>
    %cst_8 = arith.constant 0.000000e+00 : f32
    %12 = vector.broadcast %cst_8 : f32 to vector<128x256xf32>
    %13 = arith.select %11, %8, %12 : vector<128x256xi1>, vector<128x256xf32>
    %c0_9 = arith.constant 0 : index
    %c0_10 = arith.constant 0 : index
    %14 = vector.load %arg8[%c0_9, %c0_10] : memref<128x128xf32, #tpu.memory_space<vmem>>, vector<128x128xf32>
    %c0_11 = arith.constant 0 : index
    %c0_12 = arith.constant 0 : index
    %15 = vector.load %arg6[%c0_11, %c0_12] : memref<256x128xf32, #tpu.memory_space<vmem>>, vector<256x128xf32>
    %cst_13 = arith.constant dense<0.000000e+00> : vector<128x128xf32>
    %16 = tpu.matmul %13, %15, %cst_13 {dimension_numbers = #tpu.dot_dimension_numbers<[1], [0], [0], [1], [0, 0, 1, 1], [], []>} : vector<128x256xf32>, vector<256x128xf32>, vector<128x128xf32> -> vector<128x128xf32>
    %17 = arith.addf %14, %16 : vector<128x128xf32>
    %c0_14 = arith.constant 0 : index
    %c0_15 = arith.constant 0 : index
    %18 = vector.load %arg8[%c0_14, %c0_15] : memref<128x128xf32, #tpu.memory_space<vmem>>, vector<128x128xf32>
    tpu.vector_store %arg8[%c0_14, %c0_15], %17 {strides = array<i32>} : memref<128x128xf32, #tpu.memory_space<vmem>>, vector<128x128xf32>,
    return
  }
  func.func @transform_0(%arg0: i32, %arg1: i32) -> (i32, i32) {
    %c0_i32 = arith.constant 0 : i32
    %c0_i32_0 = arith.constant 0 : i32
    return %arg0, %c0_i32 : i32, i32
  }
  func.func @transform_1(%arg0: i32, %arg1: i32) -> (i32, i32) {
    %c0_i32 = arith.constant 0 : i32
    %c0_i32_0 = arith.constant 0 : i32
    return %c0_i32, %arg1 : i32, i32
  }
  func.func @transform_2(%arg0: i32, %arg1: i32) -> (i32, i32) {
    %c0_i32 = arith.constant 0 : i32
    %c0_i32_0 = arith.constant 0 : i32
    return %c0_i32, %arg1 : i32, i32
  }
  func.func @transform_3(%arg0: i32, %arg1: i32) -> (i32, i32) {
    %c0_i32 = arith.constant 0 : i32
    %c0_i32_0 = arith.constant 0 : i32
    return %c0_i32, %arg1 : i32, i32
  }
  func.func @transform_4(%arg0: i32, %arg1: i32) -> (i32, i32) {
    %c0_i32 = arith.constant 0 : i32
    %c0_i32_0 = arith.constant 0 : i32
    return %arg1, %c0_i32 : i32, i32
  }
  func.func @transform_5(%arg0: i32, %arg1: i32) -> (i32, i32) {
    %c0_i32 = arith.constant 0 : i32
    %c0_i32_0 = arith.constant 0 : i32
    %c0_i32_1 = arith.constant 0 : i32
    return %c0_i32, %c0_i32_0 : i32, i32
  }
  func.func @transform_6(%arg0: i32, %arg1: i32) -> (i32, i32) {
    %c0_i32 = arith.constant 0 : i32
    %c0_i32_0 = arith.constant 0 : i32
    return %arg0, %c0_i32 : i32, i32
  }
}

</mosaic_0001>

<llo_original>
// kernel: tpu_custom_call.1
$region0: #{tpu_custom_call.1}
  #allocation0 [shape = 'u32[]', space=smem, size = 0x4, offset = 0x4, fixed_abs, tag = 'smem constant byte address 0x4 - core index']
  #allocation1 [shape = 'u32[72,128]{1,0:T(1,128)}', space=vmem, size = 0x9000, scoped, tag = 'internal scratch']
  %s0 = inlined_call_operand.hbm [shape: f32[256,128], index: 0, kind: input, shape index: {}]
  %s1 = inlined_call_operand.hbm [shape: f32[128,512], index: 1, kind: input, shape index: {}]
  %s2 = inlined_call_operand.hbm [shape: f32[1,512], index: 2, kind: input, shape index: {}]
  %s3 = inlined_call_operand.hbm [shape: f32[1,512], index: 3, kind: input, shape index: {}]
  %s4 = inlined_call_operand.hbm [shape: f32[512,128], index: 4, kind: input, shape index: {}]
  %s5 = inlined_call_operand.vmem [shape: f32[1,128], index: 5, kind: input, shape index: {}]
  %s6 = inlined_call_operand.hbm [shape: f32[256,128], index: 6, kind: output, shape index: {}]
  %s7 = sld [smem:[#allocation0]]
  $region81: #{tpu_custom_call.1} parent=0
    _
  %s9 = ssub.s32 1, %s7
  %s10 = scalar_select 0, %s9, %s7
  $region1: #{tpu_custom_call.1} parent=0
    #allocation2 [shape = 'u8[131072]{0}', space=vmem, size = 0x20000, scoped, tag = 'input window, operand 0']
    #allocation3 [shape = 's32[2]{0}', space=sflag, size = 0x8, scoped, tag = 'scoped memory for tpu_custom_call.1']
    #allocation4 [shape = 's32[2]{0}', space=sflag, size = 0x8, scoped, tag = 'scoped memory for tpu_custom_call.1']
    #allocation5 [shape = 'u8[262144]{0}', space=vmem, size = 0x40000, scoped, tag = 'input window, operand 1']
    #allocation6 [shape = 's32[2]{0}', space=sflag, size = 0x8, scoped, tag = 'scoped memory for tpu_custom_call.1']
    #allocation7 [shape = 'u8[2048]{0}', space=vmem, size = 0x800, scoped, tag = 'input window, operand 2']
    #allocation8 [shape = 'u8[2048]{0}', space=vmem, size = 0x800, scoped, tag = 'input window, operand 3']
    #allocation9 [shape = 's32[2]{0}', space=sflag, size = 0x8, scoped, tag = 'scoped memory for tpu_custom_call.1']
    #allocation10 [shape = 'u8[262144]{0}', space=vmem, size = 0x40000, scoped, tag = 'input window, operand 4']
    #allocation11 [shape = 'u8[131072]{0}', space=vmem, size = 0x20000, scoped, tag = 'output window, operand 0']
    %11 = vsyncpa [#allocation3], 0
    %s12 = scalar_lea.sflag [#allocation3], 1
    %13 = vsyncpa %s12, 0
    %14 = vsyncpa [#allocation6], 0
    %s15 = scalar_lea.sflag [#allocation6], 1
    %16 = vsyncpa %s15, 0
    %17 = vsyncpa [#allocation9], 0
    %s18 = scalar_lea.sflag [#allocation9], 1
    %19 = vsyncpa %s18, 0
    %20 = vsyncpa [#allocation4], 0
    %s21 = scalar_lea.sflag [#allocation4], 1
    %22 = vsyncpa %s21, 0
    loop: start=0, step=1, limit=6
    $region2: #{tpu_custom_call.1} parent=1 // loop_pre_header
      _
    $region3: #{tpu_custom_call.1} parent=1 // loop_header
      %s24 = sphi 0, %s28
      %p25 = scmp.ge.s32.totalorder %s24, 6
      %s31 = sphi 0, %s43
      %s32 = sphi 0, %s39
      %s33 = sphi 0, %s31
      %s34 = sphi 0, %s32
      %s35 = sphi 0, %s33
      %s36 = sphi 0, %s34
      %s46 = sphi 0, %s48
      %s49 = sphi 0, %s46
      %s50 = sphi 0, %s49
      %s66 = sphi 0, %s50
      %s72 = sphi 0, %s74
      %s75 = sphi 0, %s72
      %s76 = sphi 0, %s75
      %s92 = sphi 0, %s76
      %s98 = sphi 0, %s100
      %s101 = sphi 0, %s98
      %s102 = sphi 0, %s101
      %s118 = sphi 0, %s102
      %s124 = sphi 0, %s126
      %s127 = sphi 0, %s124
      %s128 = sphi 0, %s127
      %s144 = sphi 0, %s128
      %s150 = sphi 0, %s152
      %s153 = sphi 0, %s150
      %s154 = sphi 0, %s153
      %s170 = sphi 0, %s154
      %s174 = sphi 0, %s174
      %s176 = sphi 0, %s174
      %s177 = sphi 0, %s176
      %s191 = sphi 0, %s177
      %s197 = sphi 0, %s199
      %s200 = sphi 0, %s197
      %s201 = sphi 0, %s200
      %s217 = sphi 0, %s201
    $region4: #{tpu_custom_call.1} parent=1 // loop_header_branch
      %27 = sbr.rel (%p25) target = $region8
    $region5: #{tpu_custom_call.1} parent=1 // loop_body
      %s29 = ssub.s32 %s24, 1
      %s30 = ssub.s32 %s24, 2
      %s37 = sadd.s32 1, %s32
      %p38 = scmp.ge.s32.totalorder %s37, 2
      %s39 = scalar_select %p38, 0, %s37
      %s40 = sadd.s32 1, %s31
      %s41 = scalar_select %p38, %s40, %s31
      %p42 = scmp.ge.s32.totalorder %s41, 2
      %s43 = scalar_select %p42, 0, %s41
      %s44 = ssub.s32 %s31, %s43
      %p45 = scmp.eq.s32.totalorder %s44, 0
      %s47 = sadd.s32 %s46, 1
      %s48 = scalar_select %p45, %s46, %s47
      %p51 = pneg %p45
      %p52 = scmp.eq.s32.totalorder %s24, 3
      %p53 = por %p51, %p52
      %p54 = scmp.ne.s32.totalorder %s46, %s49
      %p55 = scmp.eq.s32.totalorder %s24, 0
      %p56 = por %p54, %p55
      %p57 = scmp.ne.s32.totalorder %s46, %s49
      %p58 = scmp.eq.s32.totalorder %s29, 3
      %p59 = por %p57, %p58
      %p60 = scmp.ne.s32.totalorder %s49, %s50
      %p61 = scmp.eq.s32.totalorder %s29, 0
      %p62 = por %p60, %p61
      %p63 = scmp.ne.s32.totalorder %s49, %s50
      %p64 = scmp.eq.s32.totalorder %s30, 3
      %p65 = por %p63, %p64
      %p67 = scmp.ne.s32.totalorder %s50, %s66
      %p68 = scmp.eq.s32.totalorder %s30, 0
      %p69 = por %p67, %p68
      %s70 = ssub.s32 %s32, %s39
      %p71 = scmp.eq.s32.totalorder %s70, 0
      %s73 = sadd.s32 %s72, 1
      %s74 = scalar_select %p71, %s72, %s73
      %p77 = pneg %p71
      %p78 = scmp.eq.s32.totalorder %s24, 3
      %p79 = por %p77, %p78
      %p80 = scmp.ne.s32.totalorder %s72, %s75
      %p81 = scmp.eq.s32.totalorder %s24, 0
      %p82 = por %p80, %p81
      %p83 = scmp.ne.s32.totalorder %s72, %s75
      %p84 = scmp.eq.s32.totalorder %s29, 3
      %p85 = por %p83, %p84
      %p86 = scmp.ne.s32.totalorder %s75, %s76
      %p87 = scmp.eq.s32.totalorder %s29, 0
      %p88 = por %p86, %p87
      %p89 = scmp.ne.s32.totalorder %s75, %s76
      %p90 = scmp.eq.s32.totalorder %s30, 3
      %p91 = por %p89, %p90
      %p93 = scmp.ne.s32.totalorder %s76, %s92
      %p94 = scmp.eq.s32.totalorder %s30, 0
      %p95 = por %p93, %p94
      %s96 = ssub.s32 %s32, %s39
      %p97 = scmp.eq.s32.totalorder %s96, 0
      %s99 = sadd.s32 %s98, 1
      %s100 = scalar_select %p97, %s98, %s99
      %p103 = pneg %p97
      %p104 = scmp.eq.s32.totalorder %s24, 3
      %p105 = por %p103, %p104
      %p106 = scmp.ne.s32.totalorder %s98, %s101
      %p107 = scmp.eq.s32.totalorder %s24, 0
      %p108 = por %p106, %p107
      %p109 = scmp.ne.s32.totalorder %s98, %s101
      %p110 = scmp.eq.s32.totalorder %s29, 3
      %p111 = por %p109, %p110
      %p112 = scmp.ne.s32.totalorder %s101, %s102
      %p113 = scmp.eq.s32.totalorder %s29, 0
      %p114 = por %p112, %p113
      %p115 = scmp.ne.s32.totalorder %s101, %s102
      %p116 = scmp.eq.s32.totalorder %s30, 3
      %p117 = por %p115, %p116
      %p119 = scmp.ne.s32.totalorder %s102, %s118
      %p120 = scmp.eq.s32.totalorder %s30, 0
      %p121 = por %p119, %p120
      %s122 = ssub.s32 %s32, %s39
      %p123 = scmp.eq.s32.totalorder %s122, 0
      %s125 = sadd.s32 %s124, 1
      %s126 = scalar_select %p123, %s124, %s125
      %p129 = pneg %p123
      %p130 = scmp.eq.s32.totalorder %s24, 3
      %p131 = por %p129, %p130
      %p132 = scmp.ne.s32.totalorder %s124, %s127
      %p133 = scmp.eq.s32.totalorder %s24, 0
      %p134 = por %p132, %p133
      %p135 = scmp.ne.s32.totalorder %s124, %s127
      %p136 = scmp.eq.s32.totalorder %s29, 3
      %p137 = por %p135, %p136
      %p138 = scmp.ne.s32.totalorder %s127, %s128
      %p139 = scmp.eq.s32.totalorder %s29, 0
      %p140 = por %p138, %p139
      %p141 = scmp.ne.s32.totalorder %s127, %s128
      %p142 = scmp.eq.s32.totalorder %s30, 3
      %p143 = por %p141, %p142
      %p145 = scmp.ne.s32.totalorder %s128, %s144
      %p146 = scmp.eq.s32.totalorder %s30, 0
      %p147 = por %p145, %p146
      %s148 = ssub.s32 %s32, %s39
      %p149 = scmp.eq.s32.totalorder %s148, 0
      %s151 = sadd.s32 %s150, 1
      %s152 = scalar_select %p149, %s150, %s151
      %p155 = pneg %p149
      %p156 = scmp.eq.s32.totalorder %s24, 3
      %p157 = por %p155, %p156
      %p158 = scmp.ne.s32.totalorder %s150, %s153
      %p159 = scmp.eq.s32.totalorder %s24, 0
      %p160 = por %p158, %p159
      %p161 = scmp.ne.s32.totalorder %s150, %s153
      %p162 = scmp.eq.s32.totalorder %s29, 3
      %p163 = por %p161, %p162
      %p164 = scmp.ne.s32.totalorder %s153, %s154
      %p165 = scmp.eq.s32.totalorder %s29, 0
      %p166 = por %p164, %p165
      %p167 = scmp.ne.s32.totalorder %s153, %s154
      %p168 = scmp.eq.s32.totalorder %s30, 3
      %p169 = por %p167, %p168
      %p171 = scmp.ne.s32.totalorder %s154, %s170
      %p172 = scmp.eq.s32.totalorder %s30, 0
      %p173 = por %p171, %p172
      %s175 = sadd.s32 %s174, 1
      %p178 = scmp.eq.s32.totalorder %s24, 3
      %p179 = scmp.ne.s32.totalorder %s174, %s176
      %p180 = scmp.eq.s32.totalorder %s24, 0
      %p181 = por %p179, %p180
      %p182 = scmp.ne.s32.totalorder %s174, %s176
      %p183 = scmp.eq.s32.totalorder %s29, 3
      %p184 = por %p182, %p183
      %p185 = scmp.ne.s32.totalorder %s176, %s177
      %p186 = scmp.eq.s32.totalorder %s29, 0
      %p187 = por %p185, %p186
      %p188 = scmp.ne.s32.totalorder %s176, %s177
      %p189 = scmp.eq.s32.totalorder %s30, 3
      %p190 = por %p188, %p189
      %p192 = scmp.ne.s32.totalorder %s177, %s191
      %p193 = scmp.eq.s32.totalorder %s30, 0
      %p194 = por %p192, %p193
      %s195 = ssub.s32 %s31, %s43
      %p196 = scmp.eq.s32.totalorder %s195, 0
      %s198 = sadd.s32 %s197, 1
      %s199 = scalar_select %p196, %s197, %s198
      %p202 = pneg %p196
      %p203 = scmp.eq.s32.totalorder %s24, 3
      %p204 = por %p202, %p203
      %p205 = scmp.ne.s32.totalorder %s197, %s200
      %p206 = scmp.eq.s32.totalorder %s24, 0
      %p207 = por %p205, %p206
      %p208 = scmp.ne.s32.totalorder %s197, %s200
      %p209 = scmp.eq.s32.totalorder %s29, 3
      %p210 = por %p208, %p209
      %p211 = scmp.ne.s32.totalorder %s200, %s201
      %p212 = scmp.eq.s32.totalorder %s29, 0
      %p213 = por %p211, %p212
      %p214 = scmp.ne.s32.totalorder %s200, %s201
      %p215 = scmp.eq.s32.totalorder %s30, 3
      %p216 = por %p214, %p215
      %p218 = scmp.ne.s32.totalorder %s201, %s217
      %p219 = scmp.eq.s32.totalorder %s30, 0
      %p220 = por %p218, %p219
      %p221 = scmp.le.s32.totalorder 1, %s24
      %p222 = scmp.lt.s32.totalorder %s24, 5
      %p223 = pnand %p221, %p222
      %p224 = pneg %p223
      // Predicated region
      $region9: #{tpu_custom_call.1} parent=5 // pred_check
        _
      $region10: #{tpu_custom_call.1} parent=5 // pred_check_branch
        %226 = sbr.rel (%p223) target = $region12
      $region11: #{tpu_custom_call.1} parent=5 // pred_region
        %s227 = ssub.s32 %s24, 1
        // Predicated region
        $region13: #{tpu_custom_call.1} parent=11 // pred_check
          %p228 = pneg %p187
        $region14: #{tpu_custom_call.1} parent=11 // pred_check_branch
          %230 = sbr.rel (%p228) target = $region16
        $region15: #{tpu_custom_call.1} parent=11 // pred_region
          _
        $region16: #{tpu_custom_call.1} parent=11 // pred_fallthru
          _
      $region12: #{tpu_custom_call.1} parent=5 // pred_fallthru
        _
      %p231 = scmp.lt.s32.totalorder %s24, 4
      // Predicated region
      $region17: #{tpu_custom_call.1} parent=5 // pred_check
        %p232 = pneg %p231
      $region18: #{tpu_custom_call.1} parent=5 // pred_check_branch
        %234 = sbr.rel (%p232) target = $region20
      $region19: #{tpu_custom_call.1} parent=5 // pred_region
        // Predicated region
        $region21: #{tpu_custom_call.1} parent=19 // pred_check
          %p235 = pneg %p56
        $region22: #{tpu_custom_call.1} parent=19 // pred_check_branch
          %237 = sbr.rel (%p235) target = $region24
        $region23: #{tpu_custom_call.1} parent=19 // pred_region
          %s238 = sand.u32 %s46, 1
          %s239 = scalar_lea.sflag [#allocation3], %s238
          %s240 = sand.u32 %s46, 1
          %s241 = smul.addr %s240, 128
          %s242 = scalar_lea.vmem [#allocation2], %s241
          %s243 = smul.u32 16, %s31
          %245 = vsyncadd %s239, 0
          %s246 = smul.addr %s243, 8
          %s247 = scalar_lea.hbm %s0, %s246
          %s248 = sshll.u32 %s247, 4
          %s249 = int_to_ptr.hbm [resolvable:$true] %s248
          %s250 = sshll.u32 %s242, 4
          %s251 = int_to_ptr.vmem [resolvable:$true] %s250
          %256 = dma.hbm_to_vmem [thread:$0]  %s249, 2048, %s251, %s239, 128, 128, 8
        $region24: #{tpu_custom_call.1} parent=19 // pred_fallthru
          _
        // Predicated region
        $region25: #{tpu_custom_call.1} parent=19 // pred_check
          %p257 = pneg %p82
        $region26: #{tpu_custom_call.1} parent=19 // pred_check_branch
          %259 = sbr.rel (%p257) target = $region28
        $region27: #{tpu_custom_call.1} parent=19 // pred_region
          %s260 = sand.u32 %s24, 1
          %s261 = scalar_lea.sflag [#allocation6], %s260
          %s262 = sand.u32 %s72, 1
          %s263 = smul.addr %s262, 256
          %s264 = scalar_lea.vmem [#allocation5], %s263
          %s265 = smul.u32 2, %s32
          %267 = vsyncadd %s261, 0
          %s268 = smul.addr %s265, 8
          %s269 = scalar_lea.hbm %s1, %s268
          %s270 = sshll.u32 %s269, 4
          %s271 = int_to_ptr.hbm [resolvable:$true] %s270
          %s272 = sshll.u32 %s264, 4
          %s273 = int_to_ptr.vmem [resolvable:$true] %s272
          %278 = dma.hbm_to_vmem [thread:$0]  %s271, 4096, %s273, %s261, 512, 256, 16
        $region28: #{tpu_custom_call.1} parent=19 // pred_fallthru
          _
        // Predicated region
        $region29: #{tpu_custom_call.1} parent=19 // pred_check
          %p279 = pneg %p108
        $region30: #{tpu_custom_call.1} parent=19 // pred_check_branch
          %281 = sbr.rel (%p279) target = $region32
        $region31: #{tpu_custom_call.1} parent=19 // pred_region
          %s282 = sand.u32 %s24, 1
          %s283 = scalar_lea.sflag [#allocation6], %s282
          %s284 = sand.u32 %s98, 1
          %s285 = smul.addr %s284, 2
          %s286 = scalar_lea.vmem [#allocation7], %s285
          %s287 = smul.u32 2, %s32
          %289 = vsyncadd %s283, 0
          %s290 = scalar_lea.hbm %s2, %s287
          %s292 = sshll.u32 %s290, 4
          %s293 = int_to_ptr.hbm [resolvable:$true] %s292
          %s294 = sshll.u32 %s286, 4
          %s295 = int_to_ptr.vmem [resolvable:$true] %s294
          %297 = dma.hbm_to_vmem [thread:$0]  %s293, 32, %s295, %s283
        $region32: #{tpu_custom_call.1} parent=19 // pred_fallthru
          _
        // Predicated region
        $region33: #{tpu_custom_call.1} parent=19 // pred_check
          %p298 = pneg %p134
        $region34: #{tpu_custom_call.1} parent=19 // pred_check_branch
          %300 = sbr.rel (%p298) target = $region36
        $region35: #{tpu_custom_call.1} parent=19 // pred_region
          %s301 = sand.u32 %s24, 1
          %s302 = scalar_lea.sflag [#allocation9], %s301
          %s303 = sand.u32 %s124, 1
          %s304 = smul.addr %s303, 2
          %s305 = scalar_lea.vmem [#allocation8], %s304
          %s306 = smul.u32 2, %s32
          %308 = vsyncadd %s302, 0
          %s309 = scalar_lea.hbm %s3, %s306
          %s311 = sshll.u32 %s309, 4
          %s312 = int_to_ptr.hbm [resolvable:$true] %s311
          %s313 = sshll.u32 %s305, 4
          %s314 = int_to_ptr.vmem [resolvable:$true] %s313
          %316 = dma.hbm_to_vmem [thread:$0]  %s312, 32, %s314, %s302
        $region36: #{tpu_custom_call.1} parent=19 // pred_fallthru
          _
        // Predicated region
        $region37: #{tpu_custom_call.1} parent=19 // pred_check
          %p317 = pneg %p160
        $region38: #{tpu_custom_call.1} parent=19 // pred_check_branch
          %319 = sbr.rel (%p317) target = $region40
        $region39: #{tpu_custom_call.1} parent=19 // pred_region
          %s320 = sand.u32 %s24, 1
          %s321 = scalar_lea.sflag [#allocation9], %s320
          %s322 = sand.u32 %s150, 1
          %s323 = smul.addr %s322, 256
          %s324 = scalar_lea.vmem [#allocation10], %s323
          %s325 = smul.u32 32, %s32
          %327 = vsyncadd %s321, 0
          %s328 = smul.addr %s325, 8
          %s329 = scalar_lea.hbm %s4, %s328
          %s330 = sshll.u32 %s329, 4
          %s331 = int_to_ptr.hbm [resolvable:$true] %s330
          %s332 = sshll.u32 %s324, 4
          %s333 = int_to_ptr.vmem [resolvable:$true] %s332
          %338 = dma.hbm_to_vmem [thread:$0]  %s331, 4096, %s333, %s321, 128, 128, 8
        $region40: #{tpu_custom_call.1} parent=19 // pred_fallthru
          _
      $region20: #{tpu_custom_call.1} parent=5 // pred_fallthru
        _
      %p339 = scmp.le.s32.totalorder 1, %s24
      %p340 = scmp.lt.s32.totalorder %s24, 5
      %p341 = pnand %p339, %p340
      %p342 = pneg %p341
      // Predicated region
      $region41: #{tpu_custom_call.1} parent=5 // pred_check
        _
      $region42: #{tpu_custom_call.1} parent=5 // pred_check_branch
        %344 = sbr.rel (%p341) target = $region44
      $region43: #{tpu_custom_call.1} parent=5 // pred_region
        %s345 = ssub.s32 %s24, 1
        %s346 = sand.u32 %s49, 1
        %s347 = scalar_lea.sflag [#allocation3], %s346
        %s348 = sand.u32 %s49, 1
        %s349 = smul.addr %s348, 128
        %s350 = scalar_lea.vmem [#allocation2], %s349
        // Predicated region
        $region45: #{tpu_custom_call.1} parent=43 // pred_check
          %p351 = pneg %p62
        $region46: #{tpu_custom_call.1} parent=43 // pred_check_branch
          %353 = sbr.rel (%p351) target = $region48
        $region47: #{tpu_custom_call.1} parent=43 // pred_region
          %355 = dma.done %s347, 2048
        $region48: #{tpu_custom_call.1} parent=43 // pred_fallthru
          _
        %s356 = sand.u32 %s29, 1
        %s357 = scalar_lea.sflag [#allocation6], %s356
        %s358 = sand.u32 %s75, 1
        %s359 = smul.addr %s358, 256
        %s360 = scalar_lea.vmem [#allocation5], %s359
        // Predicated region
        $region49: #{tpu_custom_call.1} parent=43 // pred_check
          %p361 = pneg %p88
        $region50: #{tpu_custom_call.1} parent=43 // pred_check_branch
          %363 = sbr.rel (%p361) target = $region52
        $region51: #{tpu_custom_call.1} parent=43 // pred_region
          %365 = dma.done %s357, 4096
        $region52: #{tpu_custom_call.1} parent=43 // pred_fallthru
          _
        %s366 = sand.u32 %s29, 1
        %s367 = scalar_lea.sflag [#allocation6], %s366
        %s368 = sand.u32 %s101, 1
        %s369 = smul.addr %s368, 2
        %s370 = scalar_lea.vmem [#allocation7], %s369
        // Predicated region
        $region53: #{tpu_custom_call.1} parent=43 // pred_check
          %p371 = pneg %p114
        $region54: #{tpu_custom_call.1} parent=43 // pred_check_branch
          %373 = sbr.rel (%p371) target = $region56
        $region55: #{tpu_custom_call.1} parent=43 // pred_region
          %375 = dma.done %s367, 32
        $region56: #{tpu_custom_call.1} parent=43 // pred_fallthru
          _
        %s376 = sand.u32 %s29, 1
        %s377 = scalar_lea.sflag [#allocation9], %s376
        %s378 = sand.u32 %s127, 1
        %s379 = smul.addr %s378, 2
        %s380 = scalar_lea.vmem [#allocation8], %s379
        // Predicated region
        $region57: #{tpu_custom_call.1} parent=43 // pred_check
          %p381 = pneg %p140
        $region58: #{tpu_custom_call.1} parent=43 // pred_check_branch
          %383 = sbr.rel (%p381) target = $region60
        $region59: #{tpu_custom_call.1} parent=43 // pred_region
          %385 = dma.done %s377, 32
        $region60: #{tpu_custom_call.1} parent=43 // pred_fallthru
          _
        %s386 = sand.u32 %s29, 1
        %s387 = scalar_lea.sflag [#allocation9], %s386
        %s388 = sand.u32 %s153, 1
        %s389 = smul.addr %s388, 256
        %s390 = scalar_lea.vmem [#allocation10], %s389
        // Predicated region
        $region61: #{tpu_custom_call.1} parent=43 // pred_check
          %p391 = pneg %p166
        $region62: #{tpu_custom_call.1} parent=43 // pred_check_branch
          %393 = sbr.rel (%p391) target = $region64
        $region63: #{tpu_custom_call.1} parent=43 // pred_region
          %395 = dma.done %s387, 4096
        $region64: #{tpu_custom_call.1} parent=43 // pred_fallthru
          _
        %s396 = sand.u32 %s49, 1
        %s397 = scalar_lea.sflag [#allocation3], %s396
        %s398 = sand.u32 %s49, 1
        %s399 = smul.addr %s398, 128
        %s400 = scalar_lea.vmem [#allocation2], %s399
        %p401 = pneg %p62
        %p402 = pneg %p59
        %s403 = sand.u32 %s29, 1
        %s404 = scalar_lea.sflag [#allocation6], %s403
        %s405 = sand.u32 %s75, 1
        %s406 = smul.addr %s405, 256
        %s407 = scalar_lea.vmem [#allocation5], %s406
        %p408 = pneg %p88
        %p409 = pneg %p85
        %s410 = sand.u32 %s29, 1
        %s411 = scalar_lea.sflag [#allocation6], %s410
        %s412 = sand.u32 %s101, 1
        %s413 = smul.addr %s412, 2
        %s414 = scalar_lea.vmem [#allocation7], %s413
        %p415 = pneg %p114
        %p416 = pneg %p111
        %s417 = sand.u32 %s29, 1
        %s418 = scalar_lea.sflag [#allocation9], %s417
        %s419 = sand.u32 %s127, 1
        %s420 = smul.addr %s419, 2
        %s421 = scalar_lea.vmem [#allocation8], %s420
        %p422 = pneg %p140
        %p423 = pneg %p137
        %s424 = sand.u32 %s29, 1
        %s425 = scalar_lea.sflag [#allocation9], %s424
        %s426 = sand.u32 %s153, 1
        %s427 = smul.addr %s426, 256
        %s428 = scalar_lea.vmem [#allocation10], %s427
        %p429 = pneg %p166
        %p430 = pneg %p163
        %p431 = pneg %p187
        %p432 = pneg %p184
        %p433 = pneg %p213
        %p434 = pneg %p210
        %s435 = sand.u32 %s200, 1
        %s436 = scalar_lea.sflag [#allocation4], %s435
        %s437 = sand.u32 %s200, 1
        %s438 = smul.addr %s437, 128
        %s439 = scalar_lea.vmem [#allocation11], %s438
        %s440 = smul.u32 16, %s33
        %s441 = smul.u32 2, %s34
        %s442 = smul.u32 2, %s34
        %s443 = smul.u32 2, %s34
        %s444 = smul.u32 32, %s34
        %s445 = smul.u32 16, %s33
        %p446 = scmp.eq.s32.totalorder %s34, 0
        // Predicated region
        $region65: #{tpu_custom_call.1} parent=43 // pred_check
          %p447 = pneg %p446
        $region66: #{tpu_custom_call.1} parent=43 // pred_check_branch
          %449 = sbr.rel (%p447) target = $region68
        $region67: #{tpu_custom_call.1} parent=43 // pred_region
          %v450 = vld [vmem:[%s5] sm:$0x1]
          %v452 = vperm.slane %v450, 0
          %454 = vst [vmem:[%s439] sm:$0xff] %v452
          %455 = vst [vmem:[%s439 + $0x8] sm:$0xff] %v452
          %456 = vst [vmem:[%s439 + $0x10] sm:$0xff] %v452
          %457 = vst [vmem:[%s439 + $0x18] sm:$0xff] %v452
          %458 = vst [vmem:[%s439 + $0x20] sm:$0xff] %v452
          %459 = vst [vmem:[%s439 + $0x28] sm:$0xff] %v452
          %460 = vst [vmem:[%s439 + $0x30] sm:$0xff] %v452
          %461 = vst [vmem:[%s439 + $0x38] sm:$0xff] %v452
          %462 = vst [vmem:[%s439 + $0x40] sm:$0xff] %v452
          %463 = vst [vmem:[%s439 + $0x48] sm:$0xff] %v452
          %464 = vst [vmem:[%s439 + $0x50] sm:$0xff] %v452
          %465 = vst [vmem:[%s439 + $0x58] sm:$0xff] %v452
          %466 = vst [vmem:[%s439 + $0x60] sm:$0xff] %v452
          %467 = vst [vmem:[%s439 + $0x68] sm:$0xff] %v452
          %468 = vst [vmem:[%s439 + $0x70] sm:$0xff] %v452
          %469 = vst [vmem:[%s439 + $0x78] sm:$0xff] %v452
        $region68: #{tpu_custom_call.1} parent=43 // pred_fallthru
          _
        %v470 = vld [vmem:[%s350] sm:$0xff]
        %v471 = vld [vmem:[%s350 + $0x8] sm:$0xff]
        %v472 = vld [vmem:[%s350 + $0x10] sm:$0xff]
        %v473 = vld [vmem:[%s350 + $0x18] sm:$0xff]
        %v474 = vld [vmem:[%s350 + $0x20] sm:$0xff]
        %v475 = vld [vmem:[%s350 + $0x28] sm:$0xff]
        %v476 = vld [vmem:[%s350 + $0x30] sm:$0xff]
        %v477 = vld [vmem:[%s350 + $0x38] sm:$0xff]
        %v478 = vld [vmem:[%s350 + $0x40] sm:$0xff]
        %v479 = vld [vmem:[%s350 + $0x48] sm:$0xff]
        %v480 = vld [vmem:[%s350 + $0x50] sm:$0xff]
        %v481 = vld [vmem:[%s350 + $0x58] sm:$0xff]
        %v482 = vld [vmem:[%s350 + $0x60] sm:$0xff]
        %v483 = vld [vmem:[%s350 + $0x68] sm:$0xff]
        %v484 = vld [vmem:[%s350 + $0x70] sm:$0xff]
        %v485 = vld [vmem:[%s350 + $0x78] sm:$0xff]
        %v486 = vld [vmem:[%s360] sm:$0xff]
        %v487 = vld [vmem:[%s360 + $0x8] sm:$0xff]
        %v488 = vld [vmem:[%s360 + $0x10] sm:$0xff]
        %v489 = vld [vmem:[%s360 + $0x18] sm:$0xff]
        %v490 = vld [vmem:[%s360 + $0x20] sm:$0xff]
        %v491 = vld [vmem:[%s360 + $0x28] sm:$0xff]
        %v492 = vld [vmem:[%s360 + $0x30] sm:$0xff]
        %v493 = vld [vmem:[%s360 + $0x38] sm:$0xff]
        %v494 = vld [vmem:[%s360 + $0x40] sm:$0xff]
        %v495 = vld [vmem:[%s360 + $0x48] sm:$0xff]
        %v496 = vld [vmem:[%s360 + $0x50] sm:$0xff]
        %v497 = vld [vmem:[%s360 + $0x58] sm:$0xff]
        %v498 = vld [vmem:[%s360 + $0x60] sm:$0xff]
        %v499 = vld [vmem:[%s360 + $0x68] sm:$0xff]
        %v500 = vld [vmem:[%s360 + $0x70] sm:$0xff]
        %v501 = vld [vmem:[%s360 + $0x78] sm:$0xff]
        %v502 = vld [vmem:[%s360 + $0x80] sm:$0xff]
        %v503 = vld [vmem:[%s360 + $0x88] sm:$0xff]
        %v504 = vld [vmem:[%s360 + $0x90] sm:$0xff]
        %v505 = vld [vmem:[%s360 + $0x98] sm:$0xff]
        %v506 = vld [vmem:[%s360 + $0xa0] sm:$0xff]
        %v507 = vld [vmem:[%s360 + $0xa8] sm:$0xff]
        %v508 = vld [vmem:[%s360 + $0xb0] sm:$0xff]
        %v509 = vld [vmem:[%s360 + $0xb8] sm:$0xff]
        %v510 = vld [vmem:[%s360 + $0xc0] sm:$0xff]
        %v511 = vld [vmem:[%s360 + $0xc8] sm:$0xff]
        %v512 = vld [vmem:[%s360 + $0xd0] sm:$0xff]
        %v513 = vld [vmem:[%s360 + $0xd8] sm:$0xff]
        %v514 = vld [vmem:[%s360 + $0xe0] sm:$0xff]
        %v515 = vld [vmem:[%s360 + $0xe8] sm:$0xff]
        %v516 = vld [vmem:[%s360 + $0xf0] sm:$0xff]
        %v517 = vld [vmem:[%s360 + $0xf8] sm:$0xff]
        %v518 = vld [vmem:[%s370] sm:$0x3]
        %v520 = vperm.slane %v518, 0
        %v521 = vperm.slane %v518, 1
        %524 = vmatpush.msra.mxu0 %v516
        %525 = vmatpush.msra.mxu0 %v514
        %526 = vmatpush.msra.mxu0 %v512
        %527 = vmatpush.msra.mxu0 %v510
        %528 = vmatpush.msra.mxu0 %v508
        %529 = vmatpush.msra.mxu0 %v506
        %530 = vmatpush.msra.mxu0 %v504
        %531 = vmatpush.msra.mxu0 %v502
        %532 = vmatpush.msra.mxu0 %v500
        %533 = vmatpush.msra.mxu0 %v498
        %534 = vmatpush.msra.mxu0 %v496
        %535 = vmatpush.msra.mxu0 %v494
        %536 = vmatpush.msra.mxu0 %v492
        %537 = vmatpush.msra.mxu0 %v490
        %538 = vmatpush.msra.mxu0 %v488
        %539 = vmatpush.msra.mxu0 %v486
        %540 = vmatmul.f32.gmra.mxu0 %v470
        %v541 = vpop.f32.mrf.mxu0
        %v542 = vadd.f32 %v520, %v541
        %543 = vmatmul.f32.gmra.mxu0 %v471
        %v544 = vpop.f32.mrf.mxu0
        %v545 = vadd.f32 %v520, %v544
        %546 = vmatmul.f32.gmra.mxu0 %v472
        %v547 = vpop.f32.mrf.mxu0
        %v548 = vadd.f32 %v520, %v547
        %549 = vmatmul.f32.gmra.mxu0 %v473
        %v550 = vpop.f32.mrf.mxu0
        %v551 = vadd.f32 %v520, %v550
        %552 = vmatmul.f32.gmra.mxu0 %v474
        %v553 = vpop.f32.mrf.mxu0
        %v554 = vadd.f32 %v520, %v553
        %555 = vmatmul.f32.gmra.mxu0 %v475
        %v556 = vpop.f32.mrf.mxu0
        %v557 = vadd.f32 %v520, %v556
        %558 = vmatmul.f32.gmra.mxu0 %v476
        %v559 = vpop.f32.mrf.mxu0
        %v560 = vadd.f32 %v520, %v559
        %561 = vmatmul.f32.gmra.mxu0 %v477
        %v562 = vpop.f32.mrf.mxu0
        %v563 = vadd.f32 %v520, %v562
        %564 = vmatmul.f32.gmra.mxu0 %v478
        %v565 = vpop.f32.mrf.mxu0
        %v566 = vadd.f32 %v520, %v565
        %567 = vmatmul.f32.gmra.mxu0 %v479
        %v568 = vpop.f32.mrf.mxu0
        %v569 = vadd.f32 %v520, %v568
        %570 = vmatmul.f32.gmra.mxu0 %v480
        %v571 = vpop.f32.mrf.mxu0
        %v572 = vadd.f32 %v520, %v571
        %573 = vmatmul.f32.gmra.mxu0 %v481
        %v574 = vpop.f32.mrf.mxu0
        %v575 = vadd.f32 %v520, %v574
        %576 = vmatmul.f32.gmra.mxu0 %v482
        %v577 = vpop.f32.mrf.mxu0
        %v578 = vadd.f32 %v520, %v577
        %579 = vmatmul.f32.gmra.mxu0 %v483
        %v580 = vpop.f32.mrf.mxu0
        %v581 = vadd.f32 %v520, %v580
        %582 = vmatmul.f32.gmra.mxu0 %v484
        %v583 = vpop.f32.mrf.mxu0
        %v584 = vadd.f32 %v520, %v583
        %585 = vmatmul.f32.gmra.mxu0 %v485
        %v586 = vpop.f32.mrf.mxu0
        %v587 = vadd.f32 %v520, %v586
        %588 = vdwg.mxu0
        %589 = vmatpush.msra.mxu0 %v517
        %590 = vmatpush.msra.mxu0 %v515
        %591 = vmatpush.msra.mxu0 %v513
        %592 = vmatpush.msra.mxu0 %v511
        %593 = vmatpush.msra.mxu0 %v509
        %594 = vmatpush.msra.mxu0 %v507
        %595 = vmatpush.msra.mxu0 %v505
        %596 = vmatpush.msra.mxu0 %v503
        %597 = vmatpush.msra.mxu0 %v501
        %598 = vmatpush.msra.mxu0 %v499
        %599 = vmatpush.msra.mxu0 %v497
        %600 = vmatpush.msra.mxu0 %v495
        %601 = vmatpush.msra.mxu0 %v493
        %602 = vmatpush.msra.mxu0 %v491
        %603 = vmatpush.msra.mxu0 %v489
        %604 = vmatpush.msra.mxu0 %v487
        %605 = vmatmul.f32.gmra.mxu0 %v470
        %v606 = vpop.f32.mrf.mxu0
        %v607 = vadd.f32 %v521, %v606
        %608 = vmatmul.f32.gmra.mxu0 %v471
        %v609 = vpop.f32.mrf.mxu0
        %v610 = vadd.f32 %v521, %v609
        %611 = vmatmul.f32.gmra.mxu0 %v472
        %v612 = vpop.f32.mrf.mxu0
        %v613 = vadd.f32 %v521, %v612
        %614 = vmatmul.f32.gmra.mxu0 %v473
        %v615 = vpop.f32.mrf.mxu0
        %v616 = vadd.f32 %v521, %v615
        %617 = vmatmul.f32.gmra.mxu0 %v474
        %v618 = vpop.f32.mrf.mxu0
        %v619 = vadd.f32 %v521, %v618
        %620 = vmatmul.f32.gmra.mxu0 %v475
        %v621 = vpop.f32.mrf.mxu0
        %v622 = vadd.f32 %v521, %v621
        %623 = vmatmul.f32.gmra.mxu0 %v476
        %v624 = vpop.f32.mrf.mxu0
        %v625 = vadd.f32 %v521, %v624
        %626 = vmatmul.f32.gmra.mxu0 %v477
        %v627 = vpop.f32.mrf.mxu0
        %v628 = vadd.f32 %v521, %v627
        %629 = vmatmul.f32.gmra.mxu0 %v478
        %v630 = vpop.f32.mrf.mxu0
        %v631 = vadd.f32 %v521, %v630
        %632 = vmatmul.f32.gmra.mxu0 %v479
        %v633 = vpop.f32.mrf.mxu0
        %v634 = vadd.f32 %v521, %v633
        %635 = vmatmul.f32.gmra.mxu0 %v480
        %v636 = vpop.f32.mrf.mxu0
        %v637 = vadd.f32 %v521, %v636
        %638 = vmatmul.f32.gmra.mxu0 %v481
        %v639 = vpop.f32.mrf.mxu0
        %v640 = vadd.f32 %v521, %v639
        %641 = vmatmul.f32.gmra.mxu0 %v482
        %v642 = vpop.f32.mrf.mxu0
        %v643 = vadd.f32 %v521, %v642
        %644 = vmatmul.f32.gmra.mxu0 %v483
        %v645 = vpop.f32.mrf.mxu0
        %v646 = vadd.f32 %v521, %v645
        %647 = vmatmul.f32.gmra.mxu0 %v484
        %v648 = vpop.f32.mrf.mxu0
        %v649 = vadd.f32 %v521, %v648
        %650 = vmatmul.f32.gmra.mxu0 %v485
        %v651 = vpop.f32.mrf.mxu0
        %v652 = vadd.f32 %v521, %v651
        %653 = vdwg.mxu0
        %v654 = vld [vmem:[%s380] sm:$0x3]
        %v656 = vperm.slane %v654, 0
        %v657 = vperm.slane %v654, 1
        %vm660 = vcmp.gt.f32.partialorder %v542, %v656
        %vm661 = vcmp.gt.f32.partialorder %v607, %v657
        %vm662 = vcmp.gt.f32.partialorder %v545, %v656
        %vm663 = vcmp.gt.f32.partialorder %v610, %v657
        %vm664 = vcmp.gt.f32.partialorder %v548, %v656
        %vm665 = vcmp.gt.f32.partialorder %v613, %v657
        %vm666 = vcmp.gt.f32.partialorder %v551, %v656
        %vm667 = vcmp.gt.f32.partialorder %v616, %v657
        %vm668 = vcmp.gt.f32.partialorder %v554, %v656
        %vm669 = vcmp.gt.f32.partialorder %v619, %v657
        %vm670 = vcmp.gt.f32.partialorder %v557, %v656
        %vm671 = vcmp.gt.f32.partialorder %v622, %v657
        %vm672 = vcmp.gt.f32.partialorder %v560, %v656
        %vm673 = vcmp.gt.f32.partialorder %v625, %v657
        %vm674 = vcmp.gt.f32.partialorder %v563, %v656
        %vm675 = vcmp.gt.f32.partialorder %v628, %v657
        %vm676 = vcmp.gt.f32.partialorder %v566, %v656
        %vm677 = vcmp.gt.f32.partialorder %v631, %v657
        %vm678 = vcmp.gt.f32.partialorder %v569, %v656
        %vm679 = vcmp.gt.f32.partialorder %v634, %v657
        %vm680 = vcmp.gt.f32.partialorder %v572, %v656
        %vm681 = vcmp.gt.f32.partialorder %v637, %v657
        %vm682 = vcmp.gt.f32.partialorder %v575, %v656
        %vm683 = vcmp.gt.f32.partialorder %v640, %v657
        %vm684 = vcmp.gt.f32.partialorder %v578, %v656
        %vm685 = vcmp.gt.f32.partialorder %v643, %v657
        %vm686 = vcmp.gt.f32.partialorder %v581, %v656
        %vm687 = vcmp.gt.f32.partialorder %v646, %v657
        %vm688 = vcmp.gt.f32.partialorder %v584, %v656
        %vm689 = vcmp.gt.f32.partialorder %v649, %v657
        %vm690 = vcmp.gt.f32.partialorder %v587, %v656
        %vm691 = vcmp.gt.f32.partialorder %v652, %v657
        %v692 = vsel %vm660, %v542, 0.0
        %v693 = vsel %vm661, %v607, 0.0
        %v694 = vsel %vm662, %v545, 0.0
        %v695 = vsel %vm663, %v610, 0.0
        %v696 = vsel %vm664, %v548, 0.0
        %v697 = vsel %vm665, %v613, 0.0
        %v698 = vsel %vm666, %v551, 0.0
        %v699 = vsel %vm667, %v616, 0.0
        %v700 = vsel %vm668, %v554, 0.0
        %v701 = vsel %vm669, %v619, 0.0
        %v702 = vsel %vm670, %v557, 0.0
        %v703 = vsel %vm671, %v622, 0.0
        %v704 = vsel %vm672, %v560, 0.0
        %v705 = vsel %vm673, %v625, 0.0
        %v706 = vsel %vm674, %v563, 0.0
        %v707 = vsel %vm675, %v628, 0.0
        %v708 = vsel %vm676, %v566, 0.0
        %v709 = vsel %vm677, %v631, 0.0
        %v710 = vsel %vm678, %v569, 0.0
        %v711 = vsel %vm679, %v634, 0.0
        %v712 = vsel %vm680, %v572, 0.0
        %v713 = vsel %vm681, %v637, 0.0
        %v714 = vsel %vm682, %v575, 0.0
        %v715 = vsel %vm683, %v640, 0.0
        %v716 = vsel %vm684, %v578, 0.0
        %v717 = vsel %vm685, %v643, 0.0
        %v718 = vsel %vm686, %v581, 0.0
        %v719 = vsel %vm687, %v646, 0.0
        %v720 = vsel %vm688, %v584, 0.0
        %v721 = vsel %vm689, %v649, 0.0
        %v722 = vsel %vm690, %v587, 0.0
        %v723 = vsel %vm691, %v652, 0.0
        %v724 = vld [vmem:[%s439] sm:$0xff]
        %v725 = vld [vmem:[%s439 + $0x8] sm:$0xff]
        %v726 = vld [vmem:[%s439 + $0x10] sm:$0xff]
        %v727 = vld [vmem:[%s439 + $0x18] sm:$0xff]
        %v728 = vld [vmem:[%s439 + $0x20] sm:$0xff]
        %v729 = vld [vmem:[%s439 + $0x28] sm:$0xff]
        %v730 = vld [vmem:[%s439 + $0x30] sm:$0xff]
        %v731 = vld [vmem:[%s439 + $0x38] sm:$0xff]
        %v732 = vld [vmem:[%s439 + $0x40] sm:$0xff]
        %v733 = vld [vmem:[%s439 + $0x48] sm:$0xff]
        %v734 = vld [vmem:[%s439 + $0x50] sm:$0xff]
        %v735 = vld [vmem:[%s439 + $0x58] sm:$0xff]
        %v736 = vld [vmem:[%s439 + $0x60] sm:$0xff]
        %v737 = vld [vmem:[%s439 + $0x68] sm:$0xff]
        %v738 = vld [vmem:[%s439 + $0x70] sm:$0xff]
        %v739 = vld [vmem:[%s439 + $0x78] sm:$0xff]
        %v740 = vld [vmem:[%s390] sm:$0xff]
        %v741 = vld [vmem:[%s390 + $0x8] sm:$0xff]
        %v742 = vld [vmem:[%s390 + $0x10] sm:$0xff]
        %v743 = vld [vmem:[%s390 + $0x18] sm:$0xff]
        %v744 = vld [vmem:[%s390 + $0x20] sm:$0xff]
        %v745 = vld [vmem:[%s390 + $0x28] sm:$0xff]
        %v746 = vld [vmem:[%s390 + $0x30] sm:$0xff]
        %v747 = vld [vmem:[%s390 + $0x38] sm:$0xff]
        %v748 = vld [vmem:[%s390 + $0x40] sm:$0xff]
        %v749 = vld [vmem:[%s390 + $0x48] sm:$0xff]
        %v750 = vld [vmem:[%s390 + $0x50] sm:$0xff]
        %v751 = vld [vmem:[%s390 + $0x58] sm:$0xff]
        %v752 = vld [vmem:[%s390 + $0x60] sm:$0xff]
        %v753 = vld [vmem:[%s390 + $0x68] sm:$0xff]
        %v754 = vld [vmem:[%s390 + $0x70] sm:$0xff]
        %v755 = vld [vmem:[%s390 + $0x78] sm:$0xff]
        %v756 = vld [vmem:[%s390 + $0x80] sm:$0xff]
        %v757 = vld [vmem:[%s390 + $0x88] sm:$0xff]
        %v758 = vld [vmem:[%s390 + $0x90] sm:$0xff]
        %v759 = vld [vmem:[%s390 + $0x98] sm:$0xff]
        %v760 = vld [vmem:[%s390 + $0xa0] sm:$0xff]
        %v761 = vld [vmem:[%s390 + $0xa8] sm:$0xff]
        %v762 = vld [vmem:[%s390 + $0xb0] sm:$0xff]
        %v763 = vld [vmem:[%s390 + $0xb8] sm:$0xff]
        %v764 = vld [vmem:[%s390 + $0xc0] sm:$0xff]
        %v765 = vld [vmem:[%s390 + $0xc8] sm:$0xff]
        %v766 = vld [vmem:[%s390 + $0xd0] sm:$0xff]
        %v767 = vld [vmem:[%s390 + $0xd8] sm:$0xff]
        %v768 = vld [vmem:[%s390 + $0xe0] sm:$0xff]
        %v769 = vld [vmem:[%s390 + $0xe8] sm:$0xff]
        %v770 = vld [vmem:[%s390 + $0xf0] sm:$0xff]
        %v771 = vld [vmem:[%s390 + $0xf8] sm:$0xff]
        %772 = vmatpush.msra.mxu0 %v755
        %773 = vmatpush.msra.mxu0 %v754
        %774 = vmatpush.msra.mxu0 %v753
        %775 = vmatpush.msra.mxu0 %v752
        %776 = vmatpush.msra.mxu0 %v751
        %777 = vmatpush.msra.mxu0 %v750
        %778 = vmatpush.msra.mxu0 %v749
        %779 = vmatpush.msra.mxu0 %v748
        %780 = vmatpush.msra.mxu0 %v747
        %781 = vmatpush.msra.mxu0 %v746
        %782 = vmatpush.msra.mxu0 %v745
        %783 = vmatpush.msra.mxu0 %v744
        %784 = vmatpush.msra.mxu0 %v743
        %785 = vmatpush.msra.mxu0 %v742
        %786 = vmatpush.msra.mxu0 %v741
        %787 = vmatpush.msra.mxu0 %v740
        %788 = vmatmul.f32.gmra.mxu0 %v692
        %v789 = vpop.f32.mrf.mxu0
        %v790 = vadd.f32 0.0, %v789
        %791 = vmatmul.f32.gmra.mxu0 %v694
        %v792 = vpop.f32.mrf.mxu0
        %v793 = vadd.f32 0.0, %v792
        %794 = vmatmul.f32.gmra.mxu0 %v696
        %v795 = vpop.f32.mrf.mxu0
        %v796 = vadd.f32 0.0, %v795
        %797 = vmatmul.f32.gmra.mxu0 %v698
        %v798 = vpop.f32.mrf.mxu0
        %v799 = vadd.f32 0.0, %v798
        %800 = vmatmul.f32.gmra.mxu0 %v700
        %v801 = vpop.f32.mrf.mxu0
        %v802 = vadd.f32 0.0, %v801
        %803 = vmatmul.f32.gmra.mxu0 %v702
        %v804 = vpop.f32.mrf.mxu0
        %v805 = vadd.f32 0.0, %v804
        %806 = vmatmul.f32.gmra.mxu0 %v704
        %v807 = vpop.f32.mrf.mxu0
        %v808 = vadd.f32 0.0, %v807
        %809 = vmatmul.f32.gmra.mxu0 %v706
        %v810 = vpop.f32.mrf.mxu0
        %v811 = vadd.f32 0.0, %v810
        %812 = vmatmul.f32.gmra.mxu0 %v708
        %v813 = vpop.f32.mrf.mxu0
        %v814 = vadd.f32 0.0, %v813
        %815 = vmatmul.f32.gmra.mxu0 %v710
        %v816 = vpop.f32.mrf.mxu0
        %v817 = vadd.f32 0.0, %v816
        %818 = vmatmul.f32.gmra.mxu0 %v712
        %v819 = vpop.f32.mrf.mxu0
        %v820 = vadd.f32 0.0, %v819
        %821 = vmatmul.f32.gmra.mxu0 %v714
        %v822 = vpop.f32.mrf.mxu0
        %v823 = vadd.f32 0.0, %v822
        %824 = vmatmul.f32.gmra.mxu0 %v716
        %v825 = vpop.f32.mrf.mxu0
        %v826 = vadd.f32 0.0, %v825
        %827 = vmatmul.f32.gmra.mxu0 %v718
        %v828 = vpop.f32.mrf.mxu0
        %v829 = vadd.f32 0.0, %v828
        %830 = vmatmul.f32.gmra.mxu0 %v720
        %v831 = vpop.f32.mrf.mxu0
        %v832 = vadd.f32 0.0, %v831
        %833 = vmatmul.f32.gmra.mxu0 %v722
        %v834 = vpop.f32.mrf.mxu0
        %v835 = vadd.f32 0.0, %v834
        %836 = vdwg.mxu0
        %837 = vmatpush.msra.mxu0 %v771
        %838 = vmatpush.msra.mxu0 %v770
        %839 = vmatpush.msra.mxu0 %v769
        %840 = vmatpush.msra.mxu0 %v768
        %841 = vmatpush.msra.mxu0 %v767
        %842 = vmatpush.msra.mxu0 %v766
        %843 = vmatpush.msra.mxu0 %v765
        %844 = vmatpush.msra.mxu0 %v764
        %845 = vmatpush.msra.mxu0 %v763
        %846 = vmatpush.msra.mxu0 %v762
        %847 = vmatpush.msra.mxu0 %v761
        %848 = vmatpush.msra.mxu0 %v760
        %849 = vmatpush.msra.mxu0 %v759
        %850 = vmatpush.msra.mxu0 %v758
        %851 = vmatpush.msra.mxu0 %v757
        %852 = vmatpush.msra.mxu0 %v756
        %853 = vmatmul.f32.gmra.mxu0 %v693
        %v854 = vpop.f32.mrf.mxu0
        %v855 = vadd.f32 %v790, %v854
        %856 = vmatmul.f32.gmra.mxu0 %v695
        %v857 = vpop.f32.mrf.mxu0
        %v858 = vadd.f32 %v793, %v857
        %859 = vmatmul.f32.gmra.mxu0 %v697
        %v860 = vpop.f32.mrf.mxu0
        %v861 = vadd.f32 %v796, %v860
        %862 = vmatmul.f32.gmra.mxu0 %v699
        %v863 = vpop.f32.mrf.mxu0
        %v864 = vadd.f32 %v799, %v863
        %865 = vmatmul.f32.gmra.mxu0 %v701
        %v866 = vpop.f32.mrf.mxu0
        %v867 = vadd.f32 %v802, %v866
        %868 = vmatmul.f32.gmra.mxu0 %v703
        %v869 = vpop.f32.mrf.mxu0
        %v870 = vadd.f32 %v805, %v869
        %871 = vmatmul.f32.gmra.mxu0 %v705
        %v872 = vpop.f32.mrf.mxu0
        %v873 = vadd.f32 %v808, %v872
        %874 = vmatmul.f32.gmra.mxu0 %v707
        %v875 = vpop.f32.mrf.mxu0
        %v876 = vadd.f32 %v811, %v875
        %877 = vmatmul.f32.gmra.mxu0 %v709
        %v878 = vpop.f32.mrf.mxu0
        %v879 = vadd.f32 %v814, %v878
        %880 = vmatmul.f32.gmra.mxu0 %v711
        %v881 = vpop.f32.mrf.mxu0
        %v882 = vadd.f32 %v817, %v881
        %883 = vmatmul.f32.gmra.mxu0 %v713
        %v884 = vpop.f32.mrf.mxu0
        %v885 = vadd.f32 %v820, %v884
        %886 = vmatmul.f32.gmra.mxu0 %v715
        %v887 = vpop.f32.mrf.mxu0
        %v888 = vadd.f32 %v823, %v887
        %889 = vmatmul.f32.gmra.mxu0 %v717
        %v890 = vpop.f32.mrf.mxu0
        %v891 = vadd.f32 %v826, %v890
        %892 = vmatmul.f32.gmra.mxu0 %v719
        %v893 = vpop.f32.mrf.mxu0
        %v894 = vadd.f32 %v829, %v893
        %895 = vmatmul.f32.gmra.mxu0 %v721
        %v896 = vpop.f32.mrf.mxu0
        %v897 = vadd.f32 %v832, %v896
        %898 = vmatmul.f32.gmra.mxu0 %v723
        %v899 = vpop.f32.mrf.mxu0
        %v900 = vadd.f32 %v835, %v899
        %901 = vdwg.mxu0
        %v902 = vadd.f32 %v724, %v855
        %v903 = vadd.f32 %v725, %v858
        %v904 = vadd.f32 %v726, %v861
        %v905 = vadd.f32 %v727, %v864
        %v906 = vadd.f32 %v728, %v867
        %v907 = vadd.f32 %v729, %v870
        %v908 = vadd.f32 %v730, %v873
        %v909 = vadd.f32 %v731, %v876
        %v910 = vadd.f32 %v732, %v879
        %v911 = vadd.f32 %v733, %v882
        %v912 = vadd.f32 %v734, %v885
        %v913 = vadd.f32 %v735, %v888
        %v914 = vadd.f32 %v736, %v891
        %v915 = vadd.f32 %v737, %v894
        %v916 = vadd.f32 %v738, %v897
        %v917 = vadd.f32 %v739, %v900
        %918 = vst [vmem:[%s439] sm:$0xff] %v902
        %919 = vst [vmem:[%s439 + $0x8] sm:$0xff] %v903
        %920 = vst [vmem:[%s439 + $0x10] sm:$0xff] %v904
        %921 = vst [vmem:[%s439 + $0x18] sm:$0xff] %v905
        %922 = vst [vmem:[%s439 + $0x20] sm:$0xff] %v906
        %923 = vst [vmem:[%s439 + $0x28] sm:$0xff] %v907
        %924 = vst [vmem:[%s439 + $0x30] sm:$0xff] %v908
        %925 = vst [vmem:[%s439 + $0x38] sm:$0xff] %v909
        %926 = vst [vmem:[%s439 + $0x40] sm:$0xff] %v910
        %927 = vst [vmem:[%s439 + $0x48] sm:$0xff] %v911
        %928 = vst [vmem:[%s439 + $0x50] sm:$0xff] %v912
        %929 = vst [vmem:[%s439 + $0x58] sm:$0xff] %v913
        %930 = vst [vmem:[%s439 + $0x60] sm:$0xff] %v914
        %931 = vst [vmem:[%s439 + $0x68] sm:$0xff] %v915
        %932 = vst [vmem:[%s439 + $0x70] sm:$0xff] %v916
        %933 = vst [vmem:[%s439 + $0x78] sm:$0xff] %v917
        %s934 = sand.u32 %s200, 1
        %s935 = scalar_lea.sflag [#allocation4], %s934
        %s936 = sand.u32 %s200, 1
        %s937 = smul.addr %s936, 128
        %s938 = scalar_lea.vmem [#allocation11], %s937
        // Predicated region
        $region69: #{tpu_custom_call.1} parent=43 // pred_check
          %p939 = pneg %p210
        $region70: #{tpu_custom_call.1} parent=43 // pred_check_branch
          %941 = sbr.rel (%p939) target = $region72
        $region71: #{tpu_custom_call.1} parent=43 // pred_region
          %s942 = smul.u32 16, %s33
          %944 = vsyncadd %s935, 0
          %s945 = smul.addr %s942, 8
          %s946 = scalar_lea.hbm %s6, %s945
          %s947 = sshll.u32 %s938, 4
          %s948 = int_to_ptr.vmem [resolvable:$true] %s947
          %s949 = sshll.u32 %s946, 4
          %s950 = int_to_ptr.hbm [resolvable:$true] %s949
          %955 = dma.vmem_to_hbm [thread:$0]  %s948, 2048, %s950, %s935, 128, 128, 8
        $region72: #{tpu_custom_call.1} parent=43 // pred_fallthru
          _
      $region44: #{tpu_custom_call.1} parent=5 // pred_fallthru
        _
      %p956 = scmp.le.s32.totalorder 2, %s24
      // Predicated region
      $region73: #{tpu_custom_call.1} parent=5 // pred_check
        %p957 = pneg %p956
      $region74: #{tpu_custom_call.1} parent=5 // pred_check_branch
        %959 = sbr.rel (%p957) target = $region76
      $region75: #{tpu_custom_call.1} parent=5 // pred_region
        %s960 = ssub.s32 %s24, 2
        // Predicated region
        $region77: #{tpu_custom_call.1} parent=75 // pred_check
          %p961 = pneg %p216
        $region78: #{tpu_custom_call.1} parent=75 // pred_check_branch
          %963 = sbr.rel (%p961) target = $region80
        $region79: #{tpu_custom_call.1} parent=75 // pred_region
          %s964 = sand.u32 %s201, 1
          %s965 = scalar_lea.sflag [#allocation4], %s964
          %s966 = sand.u32 %s201, 1
          %s967 = smul.addr %s966, 128
          %s968 = scalar_lea.vmem [#allocation11], %s967
          %970 = dma.done %s965, 2048
        $region80: #{tpu_custom_call.1} parent=75 // pred_fallthru
          _
      $region76: #{tpu_custom_call.1} parent=5 // pred_fallthru
        _
    $region6: #{tpu_custom_call.1} parent=1 // loop_footer
      %s28 = sadd.s32 1, %s24
    $region7: #{tpu_custom_call.1} parent=1 // loop_footer_branch
      %23 = sbr.rel target = $region3
    $region8: #{tpu_custom_call.1} parent=1 // loop_exit
      _
    %971 = vsyncpa [#allocation3], 1
    %s972 = scalar_lea.sflag [#allocation3], 1
    %973 = vsyncpa %s972, 1
    %974 = vsyncpa [#allocation6], 1
    %s975 = scalar_lea.sflag [#allocation6], 1
    %976 = vsyncpa %s975, 1
    %977 = vsyncpa [#allocation9], 1
    %s978 = scalar_lea.sflag [#allocation9], 1
    %979 = vsyncpa %s978, 1
    %980 = vsyncpa [#allocation4], 1
    %s981 = scalar_lea.sflag [#allocation4], 1
    %982 = vsyncpa %s981, 1

</llo_original>
